<compile_context>
chip_gen: v7x
topology: tpu7x:2x2x1
jax: 0.10.0
libtpu: 0.0.40
codegen_flags: <defaults>
</compile_context>

<pallas_src>
import functools
import math

import jax
import jax.numpy as jnp
from jax.experimental import pallas as pl
from jax.experimental.pallas import tpu as pltpu

BN_EPS = 1e-5
LANE = 128


def _round_up(x, m):
    return ((x + m - 1) // m) * m


def _cdiv(a, b):
    return -(-a // b)


def conv_stats_kernel(pt_ref, wt_ref, stats_ref):
    """Pass 1: per-tile partial BN statistics (no y written to HBM).

    pt_ref:    [K, TM]      bf16 transposed im2col patch tile
    wt_ref:    [Co8, K]     bf16 weight matrix (tiny, constant block)
    stats_ref: [1, Co8, 2]  f32 per-tile (sum, sum of squares) of the conv output
    """
    yt = jnp.dot(wt_ref[...], pt_ref[...], preferred_element_type=jnp.float32)
    s = jnp.sum(yt, axis=1, keepdims=True)          # [Co8, 1]
    sq = jnp.sum(yt * yt, axis=1, keepdims=True)    # [Co8, 1]
    stats_ref[0, :, :] = jnp.concatenate([s, sq], axis=1)


def conv_bn_relu_kernel(pt_ref, wt_ref, scale_ref, shift_ref, ot_ref):
    """Pass 2: recompute the conv matmul and apply the precomputed BN affine + ReLU.

    pt_ref: [K, TM] bf16 ; wt_ref: [Co8, K] bf16
    scale_ref / shift_ref: [Co8, 1] f32 (broadcast over lanes)
    ot_ref: [Co8, TM] f32  (Cout on sublanes, M on lanes -> lane-dense stores)
    """
    yt = jnp.dot(wt_ref[...], pt_ref[...], preferred_element_type=jnp.float32)
    ot_ref[...] = jnp.maximum(yt * scale_ref[...] + shift_ref[...], 0.0)


def _pick_block_m(M, tm_max=2048):
    """Fewest tiles at or under tm_max, rounded to the 128-lane granule (minimizes
    zero-padded M rows that would be computed and stored for nothing)."""
    n_tiles = max(1, _cdiv(M, tm_max))
    return _round_up(_cdiv(M, n_tiles), LANE)


def conv2d_forward(x_nchw, weight, bias, gamma, beta,
                   stride=(1, 1), padding_size=(0, 0), block_m=None):
    """Forward pass of conv2d_: pad -> conv -> batchnorm(train) -> relu.

    x_nchw : [N, Cin, H, W]       (PyTorch NCHW convention)
    weight : [Cout, Cin, KH, KW]  (PyTorch OIHW convention)
    returns: [N, Cout, OH, OW]
    """
    del bias  # Cancelled exactly by the train-mode BN mean subtraction (zero-init anyway).

    N, Cin, H, W = x_nchw.shape
    Cout, _, KH, KW = weight.shape
    ph, pw = padding_size
    sh, sw = stride

    OH = (H + 2 * ph - KH) // sh + 1
    OW = (W + 2 * pw - KW) // sw + 1
    M = N * OH * OW
    K = Cin * KH * KW
    Co8 = _round_up(Cout, 8)   # one f32 sublane group granule; no 128-lane padding

    # Cast to bf16 BEFORE the KH*KW im2col expansion.
    xp = jnp.pad(x_nchw, ((0, 0), (0, 0), (ph, ph), (pw, pw))).astype(jnp.bfloat16)

    # Transposed im2col pT[K, M]: k = cin*KH*KW + ki*KW + kj (matches the OIHW
    # weight flattening), m = n*OH*OW + oh*OW + ow.
    windows = []
    for ki in range(KH):
        for kj in range(KW):
            windows.append(xp[:, :, ki:ki + sh * (OH - 1) + 1:sh,
                               kj:kj + sw * (OW - 1) + 1:sw])     # [N, Cin, OH, OW]
    pT = jnp.stack(windows, axis=0).reshape(KH, KW, N, Cin, OH, OW)
    pT = pT.transpose(3, 0, 1, 2, 4, 5).reshape(K, M)             # [K, M] bf16

    TM = _round_up(block_m, LANE) if block_m is not None else _pick_block_m(M)
    M_pad = _round_up(M, TM)
    num_tiles = M_pad // TM
    pT = jnp.pad(pT, ((0, 0), (0, M_pad - M)))                    # zero cols -> 0 stats

    wt = jnp.pad(weight.reshape(Cout, K).astype(jnp.float32),
                 ((0, Co8 - Cout), (0, 0))).astype(jnp.bfloat16)  # [Co8, K]

    # ---- Pass 1: per-tile partial per-channel sum / sum-of-squares ----------------
    partials = pl.pallas_call(
        conv_stats_kernel,
        out_shape=jax.ShapeDtypeStruct((num_tiles, Co8, 2), jnp.float32),
        grid=(num_tiles,),
        in_specs=[
            pl.BlockSpec((K, TM), lambda i: (0, i)),
            pl.BlockSpec((Co8, K), lambda i: (0, 0)),
        ],
        out_specs=pl.BlockSpec((1, Co8, 2), lambda i: (i, 0, 0)),
        compiler_params=pltpu.CompilerParams(
            dimension_semantics=("parallel",)),
        cost_estimate=pl.CostEstimate(
            flops=2 * M_pad * K * Co8 + 3 * M_pad * Co8,
            transcendentals=0,
            bytes_accessed=K * M_pad * 2 + Co8 * K * 2 + num_tiles * Co8 * 2 * 4),
    )(pT, wt)

    # ---- BN finalize (tiny, plain JAX): mean / biased var -> scale & shift --------
    stats = jnp.sum(partials, axis=0)                         # [Co8, 2]
    mean = stats[:, 0] / M
    var = jnp.maximum(stats[:, 1] / M - mean * mean, 0.0)     # biased variance
    g = jnp.pad(gamma.astype(jnp.float32), (0, Co8 - Cout), constant_values=1.0)
    b = jnp.pad(beta.astype(jnp.float32), (0, Co8 - Cout))
    scale = g * jax.lax.rsqrt(var + BN_EPS)
    shift = b - mean * scale
    scale = scale.reshape(Co8, 1)
    shift = shift.reshape(Co8, 1)

    # ---- Pass 2: recompute conv matmul, apply BN affine + ReLU --------------------
    out_t = pl.pallas_call(
        conv_bn_relu_kernel,
        out_shape=jax.ShapeDtypeStruct((Co8, M_pad), jnp.float32),
        grid=(num_tiles,),
        in_specs=[
            pl.BlockSpec((K, TM), lambda i: (0, i)),
            pl.BlockSpec((Co8, K), lambda i: (0, 0)),
            pl.BlockSpec((Co8, 1), lambda i: (0, 0)),
            pl.BlockSpec((Co8, 1), lambda i: (0, 0)),
        ],
        out_specs=pl.BlockSpec((Co8, TM), lambda i: (0, i)),
        compiler_params=pltpu.CompilerParams(
            dimension_semantics=("parallel",)),
        cost_estimate=pl.CostEstimate(
            flops=2 * M_pad * K * Co8 + 3 * M_pad * Co8,
            transcendentals=0,
            bytes_accessed=K * M_pad * 2 + Co8 * K * 2 + Co8 * M_pad * 4),
    )(pT, wt, scale, shift)

    # (Cout, N*OH*OW) -> NCHW (only a tiny Cout<->N swap remains).
    out = out_t[:Cout, :M].reshape(Cout, N, OH, OW)
    return jnp.transpose(out, (1, 0, 2, 3))


def xavier_uniform(key, shape):
    """torch.nn.init.xavier_uniform_ for a conv weight of shape (Cout, Cin, KH, KW)."""
    fan_out = shape[0] * shape[2] * shape[3]
    fan_in = shape[1] * shape[2] * shape[3]
    bound = math.sqrt(6.0 / (fan_in + fan_out))
    return jax.random.uniform(key, shape, jnp.float32, -bound, bound)


def reference_forward(x, weight, bias, gamma, beta, stride, padding_size):
    """Plain-JAX reference (bf16 conv inputs, f32 accumulation, matching the kernel)."""
    ph, pw = padding_size
    xp = jnp.pad(x, ((0, 0), (0, 0), (ph, ph), (pw, pw)))
    y = jax.lax.conv_general_dilated(
        xp.astype(jnp.bfloat16), weight.astype(jnp.bfloat16),
        window_strides=stride, padding='VALID',
        dimension_numbers=('NCHW', 'OIHW', 'NCHW'),
        preferred_element_type=jnp.float32)
    y = y + bias[None, :, None, None]
    m = jnp.mean(y, axis=(0, 2, 3), keepdims=True)
    v = jnp.mean((y - m) ** 2, axis=(0, 2, 3), keepdims=True)
    y = (y - m) * jax.lax.rsqrt(v + BN_EPS)
    y = y * gamma[None, :, None, None] + beta[None, :, None, None]
    return jnp.maximum(y, 0.0)


if __name__ == "__main__":
    # Module hyper-params (small, consistent with the PyTorch module).
    input_dims, output_dims = 4, 8
    kernel_size = (3, 3)
    stride = (1, 1)
    padding_size = (0, 0)   # 'VALID' path (the 'SAME' branch raises in the PyTorch module)

    key = jax.random.PRNGKey(0)
    kx, kw = jax.random.split(key)

    # Deterministic parameter init (matches the module's __init__ shapes/inits).
    weight = xavier_uniform(kw, (output_dims, input_dims, *kernel_size))
    bias = jnp.zeros((output_dims,), jnp.float32)          # use_bias=True, zeros_
    gamma = jnp.ones((output_dims,), jnp.float32)          # BatchNorm2d weight init
    beta = jnp.zeros((output_dims,), jnp.float32)          # BatchNorm2d bias init

    # Example input: NCHW.
    x = jax.random.normal(kx, (2, input_dims, 16, 16), jnp.float32)

    # block_m=128 -> 4 grid steps (M = 2*14*14 = 392, M_pad = 512), exercising the
    # multi-tile partial-stats reduction path.
    fwd = jax.jit(functools.partial(conv2d_forward, stride=stride,
                                    padding_size=padding_size, block_m=128))
    out = jax.block_until_ready(fwd(x, weight, bias, gamma, beta))

    # Silent sanity check against a plain-JAX reference (same bf16 matmul precision).
    ref = reference_forward(x, weight, bias, gamma, beta, stride, padding_size)
    assert out.shape == ref.shape == (2, output_dims, 14, 14)
    assert bool(jnp.allclose(out, ref, atol=1e-2, rtol=1e-2))

    print("KERNEL_OK")
</pallas_src>

<mosaic_0001>
module attributes {stable_mosaic.version = 11 : i64} {
  func.func @conv_stats_kernel(%arg0: i32, %arg1: memref<36x128xbf16, #tpu.memory_space<vmem>>, %arg2: memref<8x36xbf16, #tpu.memory_space<vmem>>, %arg3: memref<1x8x2xf32, #tpu.memory_space<vmem>>) attributes {dimension_semantics = [#tpu.dimension_semantics<parallel>], iteration_bounds = array<i64: 4>, scalar_prefetch = 0 : i64, scratch_operands = 0 : i64, tpu.core_type = #tpu.core_type<tc>, window_params = [{transform_indices = @transform_0, window_bounds = array<i64: 36, 128>}, {pipeline_mode = #tpu.pipeline_mode<synchronous>, transform_indices = @transform_1, window_bounds = array<i64: 8, 36>}, {transform_indices = @transform_2, window_bounds = array<i64: 1, 8, 2>}]} {
    %c0 = arith.constant 0 : index
    %c0_0 = arith.constant 0 : index
    %0 = vector.load %arg2[%c0, %c0_0] : memref<8x36xbf16, #tpu.memory_space<vmem>>, vector<8x36xbf16>
    %c0_1 = arith.constant 0 : index
    %c0_2 = arith.constant 0 : index
    %1 = vector.load %arg1[%c0_1, %c0_2] : memref<36x128xbf16, #tpu.memory_space<vmem>>, vector<36x128xbf16>
    %cst = arith.constant dense<0.000000e+00> : vector<8x128xf32>
    %2 = tpu.matmul %0, %1, %cst {dimension_numbers = #tpu.dot_dimension_numbers<[1], [0], [0], [1], [0, 0, 1, 1], [], []>} : vector<8x36xbf16>, vector<36x128xbf16>, vector<8x128xf32> -> vector<8x128xf32>
    %cst_3 = arith.constant dense<0.000000e+00> : vector<8xf32>
    %3 = vector.multi_reduction <add>, %2, %cst_3 [1] : vector<8x128xf32> to vector<8xf32>
    %4 = vector.shape_cast %3 : vector<8xf32> to vector<8x1xf32>
    %5 = arith.mulf %2, %2 : vector<8x128xf32>
    %cst_4 = arith.constant dense<0.000000e+00> : vector<8xf32>
    %6 = vector.multi_reduction <add>, %5, %cst_4 [1] : vector<8x128xf32> to vector<8xf32>
    %7 = vector.shape_cast %6 : vector<8xf32> to vector<8x1xf32>
    %8 = tpu.concatenate %4, %7 in 1 : vector<8x1xf32>, vector<8x1xf32> -> vector<8x2xf32>
    %c0_5 = arith.constant 0 : index
    %c0_6 = arith.constant 0 : index
    %c0_7 = arith.constant 0 : index
    %9 = vector.load %arg3[%c0_5, %c0_6, %c0_7] : memref<1x8x2xf32, #tpu.memory_space<vmem>>, vector<1x8x2xf32>
    %10 = vector.shape_cast %9 : vector<1x8x2xf32> to vector<8x2xf32>
    %11 = vector.shape_cast %8 : vector<8x2xf32> to vector<1x8x2xf32>
    tpu.vector_store %arg3[%c0_5, %c0_6, %c0_7], %11 {strides = array<i32>} : memref<1x8x2xf32, #tpu.memory_space<vmem>>, vector<1x8x2xf32>,
    return
  }
  func.func @transform_0(%arg0: i32) -> (i32, i32) {
    %c0_i32 = arith.constant 0 : i32
    %c0_i32_0 = arith.constant 0 : i32
    return %c0_i32, %arg0 : i32, i32
  }
  func.func @transform_1(%arg0: i32) -> (i32, i32) {
    %c0_i32 = arith.constant 0 : i32
    %c0_i32_0 = arith.constant 0 : i32
    %c0_i32_1 = arith.constant 0 : i32
    return %c0_i32, %c0_i32_0 : i32, i32
  }
  func.func @transform_2(%arg0: i32) -> (i32, i32, i32) {
    %c0_i32 = arith.constant 0 : i32
    %c0_i32_0 = arith.constant 0 : i32
    %c0_i32_1 = arith.constant 0 : i32
    return %arg0, %c0_i32, %c0_i32_0 : i32, i32, i32
  }
}

module attributes {stable_mosaic.version = 11 : i64} {
  func.func @conv_bn_relu_kernel(%arg0: i32, %arg1: memref<36x128xbf16, #tpu.memory_space<vmem>>, %arg2: memref<8x36xbf16, #tpu.memory_space<vmem>>, %arg3: memref<8x1xf32, #tpu.memory_space<vmem>>, %arg4: memref<8x1xf32, #tpu.memory_space<vmem>>, %arg5: memref<8x128xf32, #tpu.memory_space<vmem>>) attributes {dimension_semantics = [#tpu.dimension_semantics<parallel>], iteration_bounds = array<i64: 4>, scalar_prefetch = 0 : i64, scratch_operands = 0 : i64, tpu.core_type = #tpu.core_type<tc>, window_params = [{transform_indices = @transform_0, window_bounds = array<i64: 36, 128>}, {pipeline_mode = #tpu.pipeline_mode<synchronous>, transform_indices = @transform_1, window_bounds = array<i64: 8, 36>}, {pipeline_mode = #tpu.pipeline_mode<synchronous>, transform_indices = @transform_2, window_bounds = array<i64: 8, 1>}, {pipeline_mode = #tpu.pipeline_mode<synchronous>, transform_indices = @transform_3, window_bounds = array<i64: 8, 1>}, {transform_indices = @transform_4, window_bounds = array<i64: 8, 128>}]} {
    %c0 = arith.constant 0 : index
    %c0_0 = arith.constant 0 : index
    %0 = vector.load %arg2[%c0, %c0_0] : memref<8x36xbf16, #tpu.memory_space<vmem>>, vector<8x36xbf16>
    %c0_1 = arith.constant 0 : index
    %c0_2 = arith.constant 0 : index
    %1 = vector.load %arg1[%c0_1, %c0_2] : memref<36x128xbf16, #tpu.memory_space<vmem>>, vector<36x128xbf16>
    %cst = arith.constant dense<0.000000e+00> : vector<8x128xf32>
    %2 = tpu.matmul %0, %1, %cst {dimension_numbers = #tpu.dot_dimension_numbers<[1], [0], [0], [1], [0, 0, 1, 1], [], []>} : vector<8x36xbf16>, vector<36x128xbf16>, vector<8x128xf32> -> vector<8x128xf32>
    %c0_3 = arith.constant 0 : index
    %c0_4 = arith.constant 0 : index
    %3 = vector.load %arg3[%c0_3, %c0_4] : memref<8x1xf32, #tpu.memory_space<vmem>>, vector<8x1xf32>
    %4 = vector.broadcast %3 : vector<8x1xf32> to vector<8x128xf32>
    %5 = arith.mulf %2, %4 : vector<8x128xf32>
    %c0_5 = arith.constant 0 : index
    %c0_6 = arith.constant 0 : index
    %6 = vector.load %arg4[%c0_5, %c0_6] : memref<8x1xf32, #tpu.memory_space<vmem>>, vector<8x1xf32>
    %7 = vector.broadcast %6 : vector<8x1xf32> to vector<8x128xf32>
    %8 = arith.addf %5, %7 : vector<8x128xf32>
    %cst_7 = arith.constant 0.000000e+00 : f32
    %9 = vector.broadcast %cst_7 : f32 to vector<8x128xf32>
    %10 = arith.maximumf %8, %9 : vector<8x128xf32>
    %c0_8 = arith.constant 0 : index
    %c0_9 = arith.constant 0 : index
    %11 = vector.load %arg5[%c0_8, %c0_9] : memref<8x128xf32, #tpu.memory_space<vmem>>, vector<8x128xf32>
    tpu.vector_store %arg5[%c0_8, %c0_9], %10 {strides = array<i32>} : memref<8x128xf32, #tpu.memory_space<vmem>>, vector<8x128xf32>,
    return
  }
  func.func @transform_0(%arg0: i32) -> (i32, i32) {
    %c0_i32 = arith.constant 0 : i32
    %c0_i32_0 = arith.constant 0 : i32
    return %c0_i32, %arg0 : i32, i32
  }
  func.func @transform_1(%arg0: i32) -> (i32, i32) {
    %c0_i32 = arith.constant 0 : i32
    %c0_i32_0 = arith.constant 0 : i32
    %c0_i32_1 = arith.constant 0 : i32
    return %c0_i32, %c0_i32_0 : i32, i32
  }
  func.func @transform_2(%arg0: i32) -> (i32, i32) {
    %c0_i32 = arith.constant 0 : i32
    %c0_i32_0 = arith.constant 0 : i32
    %c0_i32_1 = arith.constant 0 : i32
    return %c0_i32, %c0_i32_0 : i32, i32
  }
  func.func @transform_3(%arg0: i32) -> (i32, i32) {
    %c0_i32 = arith.constant 0 : i32
    %c0_i32_0 = arith.constant 0 : i32
    %c0_i32_1 = arith.constant 0 : i32
    return %c0_i32, %c0_i32_0 : i32, i32
  }
  func.func @transform_4(%arg0: i32) -> (i32, i32) {
    %c0_i32 = arith.constant 0 : i32
    %c0_i32_0 = arith.constant 0 : i32
    return %c0_i32, %arg0 : i32, i32
  }
}

</mosaic_0001>

<llo_original>
// kernel: conv2d_forward.3
$region0: #{conv2d_forward.3}
  #allocation0 [shape = 'u32[]', space=smem, size = 0x4, offset = 0x4, fixed_abs, tag = 'smem constant byte address 0x4 - core index']
  #allocation1 [shape = 'u32[144,128]{1,0:T(1,128)}', space=vmem, size = 0x12000, scoped, tag = 'internal scratch']
  %s0 = inlined_call_operand.vmem [shape: bf16[36,512], index: 0, kind: input, shape index: {}]
  %s1 = inlined_call_operand.vmem [shape: bf16[8,36], index: 1, kind: input, shape index: {}]
  %s2 = inlined_call_operand.vmem [shape: f32[8,1], index: 2, kind: input, shape index: {}]
  %s3 = inlined_call_operand.vmem [shape: f32[8,1], index: 3, kind: input, shape index: {}]
  %s4 = inlined_call_operand.vmem [shape: f32[8,512], index: 4, kind: output, shape index: {}]
  %s5 = sld [smem:[#allocation0]]
  $region90: #{conv2d_forward.3} parent=0
    _
  %s7 = ssub.s32 1, %s5
  %s8 = scalar_select 0, %s7, %s5
  $region1: #{conv2d_forward.3} parent=0
    #allocation2 [shape = 'u8[20480]{0}', space=vmem, size = 0x5000, scoped, tag = 'input window, operand 0']
    loop: start=0, step=1, limit=6
    $region2: #{conv2d_forward.3} parent=1 // loop_pre_header
      _
    $region3: #{conv2d_forward.3} parent=1 // loop_header
      %s10 = sphi 0, %s14
      %p11 = scmp.ge.s32.totalorder %s10, 6
      %s20 = sphi 0, %s22
      %s23 = sphi 0, %s20
      %s24 = sphi 0, %s23
      %s40 = sphi 0, %s24
      %s44 = sphi 0, %s44
      %s46 = sphi 0, %s44
      %s47 = sphi 0, %s46
      %s61 = sphi 0, %s47
      %s65 = sphi 0, %s65
      %s67 = sphi 0, %s65
      %s68 = sphi 0, %s67
      %s82 = sphi 0, %s68
      %s86 = sphi 0, %s86
      %s88 = sphi 0, %s86
      %s89 = sphi 0, %s88
      %s103 = sphi 0, %s89
      %s109 = sphi 0, %s111
      %s112 = sphi 0, %s109
      %s113 = sphi 0, %s112
      %s129 = sphi 0, %s113
    $region4: #{conv2d_forward.3} parent=1 // loop_header_branch
      %13 = sbr.rel (%p11) target = $region8
    $region5: #{conv2d_forward.3} parent=1 // loop_body
      %s15 = ssub.s32 %s10, 1
      %s16 = ssub.s32 %s10, 2
      %s17 = sadd.s32 %s10, 1
      %s18 = ssub.s32 %s10, %s17
      %p19 = scmp.eq.s32.totalorder %s18, 0
      %s21 = sadd.s32 %s20, 1
      %s22 = scalar_select %p19, %s20, %s21
      %p25 = pneg %p19
      %p26 = scmp.eq.s32.totalorder %s10, 3
      %p27 = por %p25, %p26
      %p28 = scmp.ne.s32.totalorder %s20, %s23
      %p29 = scmp.eq.s32.totalorder %s10, 0
      %p30 = por %p28, %p29
      %p31 = scmp.ne.s32.totalorder %s20, %s23
      %p32 = scmp.eq.s32.totalorder %s15, 3
      %p33 = por %p31, %p32
      %p34 = scmp.ne.s32.totalorder %s23, %s24
      %p35 = scmp.eq.s32.totalorder %s15, 0
      %p36 = por %p34, %p35
      %p37 = scmp.ne.s32.totalorder %s23, %s24
      %p38 = scmp.eq.s32.totalorder %s16, 3
      %p39 = por %p37, %p38
      %p41 = scmp.ne.s32.totalorder %s24, %s40
      %p42 = scmp.eq.s32.totalorder %s16, 0
      %p43 = por %p41, %p42
      %s45 = sadd.s32 %s44, 1
      %p48 = scmp.eq.s32.totalorder %s10, 3
      %p49 = scmp.ne.s32.totalorder %s44, %s46
      %p50 = scmp.eq.s32.totalorder %s10, 0
      %p51 = por %p49, %p50
      %p52 = scmp.ne.s32.totalorder %s44, %s46
      %p53 = scmp.eq.s32.totalorder %s15, 3
      %p54 = por %p52, %p53
      %p55 = scmp.ne.s32.totalorder %s46, %s47
      %p56 = scmp.eq.s32.totalorder %s15, 0
      %p57 = por %p55, %p56
      %p58 = scmp.ne.s32.totalorder %s46, %s47
      %p59 = scmp.eq.s32.totalorder %s16, 3
      %p60 = por %p58, %p59
      %p62 = scmp.ne.s32.totalorder %s47, %s61
      %p63 = scmp.eq.s32.totalorder %s16, 0
      %p64 = por %p62, %p63
      %s66 = sadd.s32 %s65, 1
      %p69 = scmp.eq.s32.totalorder %s10, 3
      %p70 = scmp.ne.s32.totalorder %s65, %s67
      %p71 = scmp.eq.s32.totalorder %s10, 0
      %p72 = por %p70, %p71
      %p73 = scmp.ne.s32.totalorder %s65, %s67
      %p74 = scmp.eq.s32.totalorder %s15, 3
      %p75 = por %p73, %p74
      %p76 = scmp.ne.s32.totalorder %s67, %s68
      %p77 = scmp.eq.s32.totalorder %s15, 0
      %p78 = por %p76, %p77
      %p79 = scmp.ne.s32.totalorder %s67, %s68
      %p80 = scmp.eq.s32.totalorder %s16, 3
      %p81 = por %p79, %p80
      %p83 = scmp.ne.s32.totalorder %s68, %s82
      %p84 = scmp.eq.s32.totalorder %s16, 0
      %p85 = por %p83, %p84
      %s87 = sadd.s32 %s86, 1
      %p90 = scmp.eq.s32.totalorder %s10, 3
      %p91 = scmp.ne.s32.totalorder %s86, %s88
      %p92 = scmp.eq.s32.totalorder %s10, 0
      %p93 = por %p91, %p92
      %p94 = scmp.ne.s32.totalorder %s86, %s88
      %p95 = scmp.eq.s32.totalorder %s15, 3
      %p96 = por %p94, %p95
      %p97 = scmp.ne.s32.totalorder %s88, %s89
      %p98 = scmp.eq.s32.totalorder %s15, 0
      %p99 = por %p97, %p98
      %p100 = scmp.ne.s32.totalorder %s88, %s89
      %p101 = scmp.eq.s32.totalorder %s16, 3
      %p102 = por %p100, %p101
      %p104 = scmp.ne.s32.totalorder %s89, %s103
      %p105 = scmp.eq.s32.totalorder %s16, 0
      %p106 = por %p104, %p105
      %s107 = ssub.s32 %s10, %s17
      %p108 = scmp.eq.s32.totalorder %s107, 0
      %s110 = sadd.s32 %s109, 1
      %s111 = scalar_select %p108, %s109, %s110
      %p114 = pneg %p108
      %p115 = scmp.eq.s32.totalorder %s10, 3
      %p116 = por %p114, %p115
      %p117 = scmp.ne.s32.totalorder %s109, %s112
      %p118 = scmp.eq.s32.totalorder %s10, 0
      %p119 = por %p117, %p118
      %p120 = scmp.ne.s32.totalorder %s109, %s112
      %p121 = scmp.eq.s32.totalorder %s15, 3
      %p122 = por %p120, %p121
      %p123 = scmp.ne.s32.totalorder %s112, %s113
      %p124 = scmp.eq.s32.totalorder %s15, 0
      %p125 = por %p123, %p124
      %p126 = scmp.ne.s32.totalorder %s112, %s113
      %p127 = scmp.eq.s32.totalorder %s16, 3
      %p128 = por %p126, %p127
      %p130 = scmp.ne.s32.totalorder %s113, %s129
      %p131 = scmp.eq.s32.totalorder %s16, 0
      %p132 = por %p130, %p131
      %p133 = scmp.le.s32.totalorder 1, %s10
      %p134 = scmp.lt.s32.totalorder %s10, 5
      %p135 = pnand %p133, %p134
      %p136 = pneg %p135
      // Predicated region
      $region9: #{conv2d_forward.3} parent=5 // pred_check
        _
      $region10: #{conv2d_forward.3} parent=5 // pred_check_branch
        %138 = sbr.rel (%p135) target = $region12
      $region11: #{conv2d_forward.3} parent=5 // pred_region
        %s139 = ssub.s32 %s10, 1
        // Predicated region
        $region13: #{conv2d_forward.3} parent=11 // pred_check
          %p140 = pneg %p57
        $region14: #{conv2d_forward.3} parent=11 // pred_check_branch
          %142 = sbr.rel (%p140) target = $region16
        $region15: #{conv2d_forward.3} parent=11 // pred_region
          _
        $region16: #{conv2d_forward.3} parent=11 // pred_fallthru
          _
        // Predicated region
        $region17: #{conv2d_forward.3} parent=11 // pred_check
          %p143 = pneg %p78
        $region18: #{conv2d_forward.3} parent=11 // pred_check_branch
          %145 = sbr.rel (%p143) target = $region20
        $region19: #{conv2d_forward.3} parent=11 // pred_region
          _
        $region20: #{conv2d_forward.3} parent=11 // pred_fallthru
          _
        // Predicated region
        $region21: #{conv2d_forward.3} parent=11 // pred_check
          %p146 = pneg %p99
        $region22: #{conv2d_forward.3} parent=11 // pred_check_branch
          %148 = sbr.rel (%p146) target = $region24
        $region23: #{conv2d_forward.3} parent=11 // pred_region
          _
        $region24: #{conv2d_forward.3} parent=11 // pred_fallthru
          _
      $region12: #{conv2d_forward.3} parent=5 // pred_fallthru
        _
      %p149 = scmp.lt.s32.totalorder %s10, 4
      // Predicated region
      $region25: #{conv2d_forward.3} parent=5 // pred_check
        %p150 = pneg %p149
      $region26: #{conv2d_forward.3} parent=5 // pred_check_branch
        %152 = sbr.rel (%p150) target = $region28
      $region27: #{conv2d_forward.3} parent=5 // pred_region
        // Predicated region
        $region29: #{conv2d_forward.3} parent=27 // pred_check
          %p153 = pneg %p30
        $region30: #{conv2d_forward.3} parent=27 // pred_check_branch
          %155 = sbr.rel (%p153) target = $region32
        $region31: #{conv2d_forward.3} parent=27 // pred_region
          %s156 = sand.u32 %s20, 1
          %s157 = sand.u32 %s20, 1
          %s158 = smul.addr %s157, 20
          %s159 = scalar_lea.vmem [#allocation2], %s158
          %s160 = smul.addr %s10, 4
          %s161 = scalar_lea.vmem %s0, %s160
          // Predicated region
          $region33: #{conv2d_forward.3} parent=31 // pred_check
            _
          $region34: #{conv2d_forward.3} parent=31 // pred_check_branch
            %163 = sbr.rel (0) target = $region36
          $region35: #{conv2d_forward.3} parent=31 // pred_region
            // Predicated region
            $region37: #{conv2d_forward.3} parent=35 // pred_check
              _
            $region38: #{conv2d_forward.3} parent=35 // pred_check_branch
              %165 = sbr.rel target = $region40
            $region39: #{conv2d_forward.3} parent=35 // pred_region
              // Predicated region
              $region52: #{conv2d_forward.3} parent=39 // pred_check
                _
              $region53: #{conv2d_forward.3} parent=39 // pred_check_branch
                %188 = sbr.rel (0) target = $region55
              $region54: #{conv2d_forward.3} parent=39 // pred_region
                loop: start=0, step=1, limit=1
                $region56: #{conv2d_forward.3} parent=54 // loop_pre_header
                  _
                $region57: #{conv2d_forward.3} parent=54 // loop_header
                  %s190 = sphi 0, %s194
                  %p191 = scmp.ge.s32.totalorder %s190, 1
                  %s195 = sphi %s161, %s161
                  %s196 = sphi %s159, %s159
                $region58: #{conv2d_forward.3} parent=54 // loop_header_branch
                  %193 = sbr.rel (%p191) target = $region62
                $region59: #{conv2d_forward.3} parent=54 // loop_body
                  _
                $region60: #{conv2d_forward.3} parent=54 // loop_footer
                  %s194 = sadd.s32 1, %s190
                $region61: #{conv2d_forward.3} parent=54 // loop_footer_branch
                  %189 = sbr.rel target = $region57
                $region62: #{conv2d_forward.3} parent=54 // loop_exit
                  _
                loop: start=0, step=1, limit=1
                $region63: #{conv2d_forward.3} parent=54 // loop_pre_header
                  _
                $region64: #{conv2d_forward.3} parent=54 // loop_header
                  %s199 = sphi 0, %s203
                  %p200 = scmp.ge.s32.totalorder %s199, 1
                  %s204 = sphi %s161, %s161
                  %s205 = sphi %s159, %s159
                $region65: #{conv2d_forward.3} parent=54 // loop_header_branch
                  %202 = sbr.rel (%p200) target = $region69
                $region66: #{conv2d_forward.3} parent=54 // loop_body
                  %v206 = vld [vmem:[%s204] sm:$0xf]
                  %207 = vst [vmem:[%s205] sm:$0xf] %v206
                  %v208 = vld [vmem:[%s204 + $0x10] sm:$0xf]
                  %209 = vst [vmem:[%s205 + $0x4] sm:$0xf] %v208
                  %v210 = vld [vmem:[%s204 + $0x20] sm:$0xf]
                  %211 = vst [vmem:[%s205 + $0x8] sm:$0xf] %v210
                  %v212 = vld [vmem:[%s204 + $0x30] sm:$0xf]
                  %213 = vst [vmem:[%s205 + $0xc] sm:$0xf] %v212
                  %v214 = vld [vmem:[%s204 + $0x40] sm:$0xf]
                  %215 = vst [vmem:[%s205 + $0x10] sm:$0xf] %v214
                $region67: #{conv2d_forward.3} parent=54 // loop_footer
                  %s203 = sadd.s32 1, %s199
                $region68: #{conv2d_forward.3} parent=54 // loop_footer_branch
                  %198 = sbr.rel target = $region64
                $region69: #{conv2d_forward.3} parent=54 // loop_exit
                  _
              $region55: #{conv2d_forward.3} parent=39 // pred_fallthru
                _
            $region40: #{conv2d_forward.3} parent=35 // pred_fallthru
              _
            // Predicated region
            $region41: #{conv2d_forward.3} parent=35 // pred_check
              _
            $region42: #{conv2d_forward.3} parent=35 // pred_check_branch
              %167 = sbr.rel (0) target = $region44
            $region43: #{conv2d_forward.3} parent=35 // pred_region
              loop: start=0, step=1, limit=1
              $region45: #{conv2d_forward.3} parent=43 // loop_pre_header
                _
              $region46: #{conv2d_forward.3} parent=43 // loop_header
                %s170 = sphi 0, %s174
                %p171 = scmp.ge.s32.totalorder %s170, 1
                %s175 = sphi %s161, %s161
                %s176 = sphi %s159, %s159
              $region47: #{conv2d_forward.3} parent=43 // loop_header_branch
                %173 = sbr.rel (%p171) target = $region51
              $region48: #{conv2d_forward.3} parent=43 // loop_body
                %v177 = vld [vmem:[%s175] sm:$0xf]
                %178 = vst [vmem:[%s176] sm:$0xf] %v177
                %v179 = vld [vmem:[%s175 + $0x10] sm:$0xf]
                %180 = vst [vmem:[%s176 + $0x4] sm:$0xf] %v179
                %v181 = vld [vmem:[%s175 + $0x20] sm:$0xf]
                %182 = vst [vmem:[%s176 + $0x8] sm:$0xf] %v181
                %v183 = vld [vmem:[%s175 + $0x30] sm:$0xf]
                %184 = vst [vmem:[%s176 + $0xc] sm:$0xf] %v183
                %v185 = vld [vmem:[%s175 + $0x40] sm:$0xf]
                %186 = vst [vmem:[%s176 + $0x10] sm:$0xf] %v185
              $region49: #{conv2d_forward.3} parent=43 // loop_footer
                %s174 = sadd.s32 1, %s170
              $region50: #{conv2d_forward.3} parent=43 // loop_footer_branch
                %169 = sbr.rel target = $region46
              $region51: #{conv2d_forward.3} parent=43 // loop_exit
                _
            $region44: #{conv2d_forward.3} parent=35 // pred_fallthru
              _
          $region36: #{conv2d_forward.3} parent=31 // pred_fallthru
            _
          %216 = vnop
        $region32: #{conv2d_forward.3} parent=27 // pred_fallthru
          _
      $region28: #{conv2d_forward.3} parent=5 // pred_fallthru
        _
      %p217 = scmp.le.s32.totalorder 1, %s10
      %p218 = scmp.lt.s32.totalorder %s10, 5
      %p219 = pnand %p217, %p218
      %p220 = pneg %p219
      // Predicated region
      $region70: #{conv2d_forward.3} parent=5 // pred_check
        _
      $region71: #{conv2d_forward.3} parent=5 // pred_check_branch
        %222 = sbr.rel (%p219) target = $region73
      $region72: #{conv2d_forward.3} parent=5 // pred_region
        %s223 = ssub.s32 %s10, 1
        %s224 = sand.u32 %s23, 1
        %s225 = sand.u32 %s23, 1
        %s226 = smul.addr %s225, 20
        %s227 = scalar_lea.vmem [#allocation2], %s226
        // Predicated region
        $region74: #{conv2d_forward.3} parent=72 // pred_check
          %p228 = pneg %p36
        $region75: #{conv2d_forward.3} parent=72 // pred_check_branch
          %230 = sbr.rel (%p228) target = $region77
        $region76: #{conv2d_forward.3} parent=72 // pred_region
          _
        $region77: #{conv2d_forward.3} parent=72 // pred_fallthru
          _
        %s231 = sand.u32 %s23, 1
        %s232 = sand.u32 %s23, 1
        %s233 = smul.addr %s232, 20
        %s234 = scalar_lea.vmem [#allocation2], %s233
        %p235 = pneg %p36
        %p236 = pneg %p33
        %p237 = pneg %p57
        %p238 = pneg %p54
        %p239 = pneg %p78
        %p240 = pneg %p75
        %p241 = pneg %p99
        %p242 = pneg %p96
        %p243 = pneg %p125
        %p244 = pneg %p122
        %p245 = scmp.lt.s32.totalorder %s15, 3
        %s246 = scalar_select %p245, %s15, 3
        %s247 = smul.addr %s246, 8
        %s248 = scalar_lea.vmem %s4, %s247
        %p249 = scmp.lt.s32.totalorder %s15, 3
        %s250 = scalar_select %p249, %s15, 3
        %s251 = smul.addr %s250, 8
        %s252 = scalar_lea.vmem %s4, %s251
        %v254 = vld [vmem:[%s1] sm:$0xf]
        %v255 = vld [vmem:[%s227] sm:$0xf]
        %v256 = vld [vmem:[%s227 + $0x4] sm:$0xf]
        %v257 = vld [vmem:[%s227 + $0x8] sm:$0xf]
        %v258 = vld [vmem:[%s227 + $0xc] sm:$0xf]
        %v259 = vld [vmem:[%s227 + $0x10] sm:$0x3]
        %v265 = vunpack.c.l.b16 %v255
        %v266 = vunpack.c.l.b16 %v256
        %v267 = vunpack.c.l.b16 %v257
        %v268 = vunpack.c.l.b16 %v258
        %v269 = vunpack.c.l.b16 %v259
        %v270 = vpack.c.b16 %v266, %v265
        %v271 = vpack.c.b16 %v268, %v267
        %v272 = vpack.c.b16 %v269, %v269
        %vm275 = vcmask 293888
        %v277 = vsel %vm275, %v254, 0
        %vm279 = vcmask 1041408
        %v281 = vsel %vm279, %v272, 0
        %283 = vmatprep.subr.bf16.mxu0 0
        %284 = vmatpush1.bf16.msra.mxu0 %v270
        %285 = vmatprep.subr.bf16.mxu0 0
        %286 = vmatpush1.bf16.msra.mxu0 %v271
        %287 = vmatprep.subr.bf16.mxu0 0
        %288 = vmatpush1.bf16.msra.mxu0 %v281
        %289 = vmatprep.subr.bf16.mxu0 0
        %290 = vmatpush1.bf16.msra.mxu0 0
        %291 = vmatprep.subr.bf16.mxu0 0
        %292 = vmatpush1.bf16.msra.mxu0 0
        %293 = vmatprep.subr.bf16.mxu0 0
        %294 = vmatpush1.bf16.msra.mxu0 0
        %295 = vmatprep.subr.bf16.mxu0 0
        %296 = vmatpush1.bf16.msra.mxu0 0
        %297 = vmatprep.subr.bf16.mxu0 0
        %298 = vmatpush1.bf16.msra.mxu0 0
        %299 = vmatprep.subr.bf16.mxu0 0
        %300 = vmatpush1.bf16.msra.mxu0 0
        %301 = vmatprep.subr.bf16.mxu0 0
        %302 = vmatpush1.bf16.msra.mxu0 0
        %303 = vmatprep.subr.bf16.mxu0 0
        %304 = vmatpush1.bf16.msra.mxu0 0
        %305 = vmatprep.subr.bf16.mxu0 0
        %306 = vmatpush1.bf16.msra.mxu0 0
        %307 = vmatprep.subr.bf16.mxu0 0
        %308 = vmatpush1.bf16.msra.mxu0 0
        %309 = vmatprep.subr.bf16.mxu0 0
        %310 = vmatpush1.bf16.msra.mxu0 0
        %311 = vmatprep.subr.bf16.mxu0 0
        %312 = vmatpush1.bf16.msra.mxu0 0
        %313 = vmatprep.subr.bf16.mxu0 0
        %314 = vmatpush1.bf16.msra.mxu0 0
        %315 = vmatprep.mubr.bf16.mxu0 0
        %316 = vmatmul.mubr.bf16.gmra.mrb[0].mxu0 %v277
        %v317 = vpop.f32.mrb[0].mxu0
        %v318 = vadd.f32 0.0, %v317
        %v319 = vpop.f32.mrb[0].mxu0
        %v320 = vpop.f32.mrb[0].mxu0
        %v321 = vpop.f32.mrb[0].mxu0
        %322 = vdwg.mxu0
        %v323 = vld [vmem:[%s2] sm:$0xff]
        %325 = vset.pattern.permute.xlu0 0
        %326 = vperm.xlu0 %325, %v323
        %v327 = vpop.permute.xlu0 %326
        %v329 = vmul.f32 %v318, %v327
        %v330 = vld [vmem:[%s3] sm:$0xff]
        %332 = vset.pattern.permute.xlu0 0
        %333 = vperm.xlu0 %332, %v330
        %v334 = vpop.permute.xlu0 %333
        %v336 = vadd.f32 %v329, %v334
        %v337 = vmax.f32 %v336, 0.0
        %338 = vst [vmem:[%s252] sm:$0xff] %v337
        %p339 = scmp.lt.s32.totalorder %s15, 3
        %s340 = scalar_select %p339, %s15, 3
        %s341 = smul.addr %s340, 8
        %s342 = scalar_lea.vmem %s4, %s341
        // Predicated region
        $region78: #{conv2d_forward.3} parent=72 // pred_check
          %p343 = pneg %p122
        $region79: #{conv2d_forward.3} parent=72 // pred_check_branch
          %345 = sbr.rel (%p343) target = $region81
        $region80: #{conv2d_forward.3} parent=72 // pred_region
          _
        $region81: #{conv2d_forward.3} parent=72 // pred_fallthru
          _
      $region73: #{conv2d_forward.3} parent=5 // pred_fallthru
        _
      %p346 = scmp.le.s32.totalorder 2, %s10
      // Predicated region
      $region82: #{conv2d_forward.3} parent=5 // pred_check
        %p347 = pneg %p346
      $region83: #{conv2d_forward.3} parent=5 // pred_check_branch
        %349 = sbr.rel (%p347) target = $region85
      $region84: #{conv2d_forward.3} parent=5 // pred_region
        %s350 = ssub.s32 %s10, 2
        // Predicated region
        $region86: #{conv2d_forward.3} parent=84 // pred_check
          %p351 = pneg %p128
        $region87: #{conv2d_forward.3} parent=84 // pred_check_branch
          %353 = sbr.rel (%p351) target = $region89
        $region88: #{conv2d_forward.3} parent=84 // pred_region
          %p354 = scmp.lt.s32.totalorder %s16, 3
          %s355 = scalar_select %p354, %s16, 3
          %s356 = smul.addr %s355, 8
          %s357 = scalar_lea.vmem %s4, %s356
        $region89: #{conv2d_forward.3} parent=84 // pred_fallthru
          _
      $region85: #{conv2d_forward.3} parent=5 // pred_fallthru
        _
    $region6: #{conv2d_forward.3} parent=1 // loop_footer
      %s14 = sadd.s32 1, %s10
    $region7: #{conv2d_forward.3} parent=1 // loop_footer_branch
      %9 = sbr.rel target = $region3
    $region8: #{conv2d_forward.3} parent=1 // loop_exit
      _

// kernel: conv2d_forward.2
$region0: #{conv2d_forward.2}
  #allocation0 [shape = 'u32[]', space=smem, size = 0x4, offset = 0x4, fixed_abs, tag = 'smem constant byte address 0x4 - core index']
  #allocation1 [shape = 'u32[144,128]{1,0:T(1,128)}', space=vmem, size = 0x12000, scoped, tag = 'internal scratch']
  %s0 = inlined_call_operand.vmem [shape: bf16[36,512], index: 0, kind: input, shape index: {}]
  %s1 = inlined_call_operand.vmem [shape: bf16[8,36], index: 1, kind: input, shape index: {}]
  %s2 = inlined_call_operand.vmem [shape: f32[4,8,2], index: 2, kind: output, shape index: {}]
  %s3 = sld [smem:[#allocation0]]
  $region82: #{conv2d_forward.2} parent=0
    _
  %s5 = ssub.s32 1, %s3
  %s6 = scalar_select 0, %s5, %s3
  $region1: #{conv2d_forward.2} parent=0
    #allocation2 [shape = 'u8[20480]{0}', space=vmem, size = 0x5000, scoped, tag = 'input window, operand 0']
    loop: start=0, step=1, limit=6
    $region2: #{conv2d_forward.2} parent=1 // loop_pre_header
      _
    $region3: #{conv2d_forward.2} parent=1 // loop_header
      %s8 = sphi 0, %s12
      %p9 = scmp.ge.s32.totalorder %s8, 6
      %s18 = sphi 0, %s20
      %s21 = sphi 0, %s18
      %s22 = sphi 0, %s21
      %s38 = sphi 0, %s22
      %s42 = sphi 0, %s42
      %s44 = sphi 0, %s42
      %s45 = sphi 0, %s44
      %s59 = sphi 0, %s45
      %s65 = sphi 0, %s67
      %s68 = sphi 0, %s65
      %s69 = sphi 0, %s68
      %s85 = sphi 0, %s69
    $region4: #{conv2d_forward.2} parent=1 // loop_header_branch
      %11 = sbr.rel (%p9) target = $region8
    $region5: #{conv2d_forward.2} parent=1 // loop_body
      %s13 = ssub.s32 %s8, 1
      %s14 = ssub.s32 %s8, 2
      %s15 = sadd.s32 %s8, 1
      %s16 = ssub.s32 %s8, %s15
      %p17 = scmp.eq.s32.totalorder %s16, 0
      %s19 = sadd.s32 %s18, 1
      %s20 = scalar_select %p17, %s18, %s19
      %p23 = pneg %p17
      %p24 = scmp.eq.s32.totalorder %s8, 3
      %p25 = por %p23, %p24
      %p26 = scmp.ne.s32.totalorder %s18, %s21
      %p27 = scmp.eq.s32.totalorder %s8, 0
      %p28 = por %p26, %p27
      %p29 = scmp.ne.s32.totalorder %s18, %s21
      %p30 = scmp.eq.s32.totalorder %s13, 3
      %p31 = por %p29, %p30
      %p32 = scmp.ne.s32.totalorder %s21, %s22
      %p33 = scmp.eq.s32.totalorder %s13, 0
      %p34 = por %p32, %p33
      %p35 = scmp.ne.s32.totalorder %s21, %s22
      %p36 = scmp.eq.s32.totalorder %s14, 3
      %p37 = por %p35, %p36
      %p39 = scmp.ne.s32.totalorder %s22, %s38
      %p40 = scmp.eq.s32.totalorder %s14, 0
      %p41 = por %p39, %p40
      %s43 = sadd.s32 %s42, 1
      %p46 = scmp.eq.s32.totalorder %s8, 3
      %p47 = scmp.ne.s32.totalorder %s42, %s44
      %p48 = scmp.eq.s32.totalorder %s8, 0
      %p49 = por %p47, %p48
      %p50 = scmp.ne.s32.totalorder %s42, %s44
      %p51 = scmp.eq.s32.totalorder %s13, 3
      %p52 = por %p50, %p51
      %p53 = scmp.ne.s32.totalorder %s44, %s45
      %p54 = scmp.eq.s32.totalorder %s13, 0
      %p55 = por %p53, %p54
      %p56 = scmp.ne.s32.totalorder %s44, %s45
      %p57 = scmp.eq.s32.totalorder %s14, 3
      %p58 = por %p56, %p57
      %p60 = scmp.ne.s32.totalorder %s45, %s59
      %p61 = scmp.eq.s32.totalorder %s14, 0
      %p62 = por %p60, %p61
      %s63 = ssub.s32 %s8, %s15
      %p64 = scmp.eq.s32.totalorder %s63, 0
      %s66 = sadd.s32 %s65, 1
      %s67 = scalar_select %p64, %s65, %s66
      %p70 = pneg %p64
      %p71 = scmp.eq.s32.totalorder %s8, 3
      %p72 = por %p70, %p71
      %p73 = scmp.ne.s32.totalorder %s65, %s68
      %p74 = scmp.eq.s32.totalorder %s8, 0
      %p75 = por %p73, %p74
      %p76 = scmp.ne.s32.totalorder %s65, %s68
      %p77 = scmp.eq.s32.totalorder %s13, 3
      %p78 = por %p76, %p77
      %p79 = scmp.ne.s32.totalorder %s68, %s69
      %p80 = scmp.eq.s32.totalorder %s13, 0
      %p81 = por %p79, %p80
      %p82 = scmp.ne.s32.totalorder %s68, %s69
      %p83 = scmp.eq.s32.totalorder %s14, 3
      %p84 = por %p82, %p83
      %p86 = scmp.ne.s32.totalorder %s69, %s85
      %p87 = scmp.eq.s32.totalorder %s14, 0
      %p88 = por %p86, %p87
      %p89 = scmp.le.s32.totalorder 1, %s8
      %p90 = scmp.lt.s32.totalorder %s8, 5
      %p91 = pnand %p89, %p90
      %p92 = pneg %p91
      // Predicated region
      $region9: #{conv2d_forward.2} parent=5 // pred_check
        _
      $region10: #{conv2d_forward.2} parent=5 // pred_check_branch
        %94 = sbr.rel (%p91) target = $region12
      $region11: #{conv2d_forward.2} parent=5 // pred_region
        %s95 = ssub.s32 %s8, 1
        // Predicated region
        $region13: #{conv2d_forward.2} parent=11 // pred_check
          %p96 = pneg %p55
        $region14: #{conv2d_forward.2} parent=11 // pred_check_branch
          %98 = sbr.rel (%p96) target = $region16
        $region15: #{conv2d_forward.2} parent=11 // pred_region
          _
        $region16: #{conv2d_forward.2} parent=11 // pred_fallthru
          _
      $region12: #{conv2d_forward.2} parent=5 // pred_fallthru
        _
      %p99 = scmp.lt.s32.totalorder %s8, 4
      // Predicated region
      $region17: #{conv2d_forward.2} parent=5 // pred_check
        %p100 = pneg %p99
      $region18: #{conv2d_forward.2} parent=5 // pred_check_branch
        %102 = sbr.rel (%p100) target = $region20
      $region19: #{conv2d_forward.2} parent=5 // pred_region
        // Predicated region
        $region21: #{conv2d_forward.2} parent=19 // pred_check
          %p103 = pneg %p28
        $region22: #{conv2d_forward.2} parent=19 // pred_check_branch
          %105 = sbr.rel (%p103) target = $region24
        $region23: #{conv2d_forward.2} parent=19 // pred_region
          %s106 = sand.u32 %s18, 1
          %s107 = sand.u32 %s18, 1
          %s108 = smul.addr %s107, 20
          %s109 = scalar_lea.vmem [#allocation2], %s108
          %s110 = smul.addr %s8, 4
          %s111 = scalar_lea.vmem %s0, %s110
          // Predicated region
          $region25: #{conv2d_forward.2} parent=23 // pred_check
            _
          $region26: #{conv2d_forward.2} parent=23 // pred_check_branch
            %113 = sbr.rel (0) target = $region28
          $region27: #{conv2d_forward.2} parent=23 // pred_region
            // Predicated region
            $region29: #{conv2d_forward.2} parent=27 // pred_check
              _
            $region30: #{conv2d_forward.2} parent=27 // pred_check_branch
              %115 = sbr.rel target = $region32
            $region31: #{conv2d_forward.2} parent=27 // pred_region
              // Predicated region
              $region44: #{conv2d_forward.2} parent=31 // pred_check
                _
              $region45: #{conv2d_forward.2} parent=31 // pred_check_branch
                %138 = sbr.rel (0) target = $region47
              $region46: #{conv2d_forward.2} parent=31 // pred_region
                loop: start=0, step=1, limit=1
                $region48: #{conv2d_forward.2} parent=46 // loop_pre_header
                  _
                $region49: #{conv2d_forward.2} parent=46 // loop_header
                  %s140 = sphi 0, %s144
                  %p141 = scmp.ge.s32.totalorder %s140, 1
                  %s145 = sphi %s111, %s111
                  %s146 = sphi %s109, %s109
                $region50: #{conv2d_forward.2} parent=46 // loop_header_branch
                  %143 = sbr.rel (%p141) target = $region54
                $region51: #{conv2d_forward.2} parent=46 // loop_body
                  _
                $region52: #{conv2d_forward.2} parent=46 // loop_footer
                  %s144 = sadd.s32 1, %s140
                $region53: #{conv2d_forward.2} parent=46 // loop_footer_branch
                  %139 = sbr.rel target = $region49
                $region54: #{conv2d_forward.2} parent=46 // loop_exit
                  _
                loop: start=0, step=1, limit=1
                $region55: #{conv2d_forward.2} parent=46 // loop_pre_header
                  _
                $region56: #{conv2d_forward.2} parent=46 // loop_header
                  %s149 = sphi 0, %s153
                  %p150 = scmp.ge.s32.totalorder %s149, 1
                  %s154 = sphi %s111, %s111
                  %s155 = sphi %s109, %s109
                $region57: #{conv2d_forward.2} parent=46 // loop_header_branch
                  %152 = sbr.rel (%p150) target = $region61
                $region58: #{conv2d_forward.2} parent=46 // loop_body
                  %v156 = vld [vmem:[%s154] sm:$0xf]
                  %157 = vst [vmem:[%s155] sm:$0xf] %v156
                  %v158 = vld [vmem:[%s154 + $0x10] sm:$0xf]
                  %159 = vst [vmem:[%s155 + $0x4] sm:$0xf] %v158
                  %v160 = vld [vmem:[%s154 + $0x20] sm:$0xf]
                  %161 = vst [vmem:[%s155 + $0x8] sm:$0xf] %v160
                  %v162 = vld [vmem:[%s154 + $0x30] sm:$0xf]
                  %163 = vst [vmem:[%s155 + $0xc] sm:$0xf] %v162
                  %v164 = vld [vmem:[%s154 + $0x40] sm:$0xf]
                  %165 = vst [vmem:[%s155 + $0x10] sm:$0xf] %v164
                $region59: #{conv2d_forward.2} parent=46 // loop_footer
                  %s153 = sadd.s32 1, %s149
                $region60: #{conv2d_forward.2} parent=46 // loop_footer_branch
                  %148 = sbr.rel target = $region56
                $region61: #{conv2d_forward.2} parent=46 // loop_exit
                  _
              $region47: #{conv2d_forward.2} parent=31 // pred_fallthru
                _
            $region32: #{conv2d_forward.2} parent=27 // pred_fallthru
              _
            // Predicated region
            $region33: #{conv2d_forward.2} parent=27 // pred_check
              _
            $region34: #{conv2d_forward.2} parent=27 // pred_check_branch
              %117 = sbr.rel (0) target = $region36
            $region35: #{conv2d_forward.2} parent=27 // pred_region
              loop: start=0, step=1, limit=1
              $region37: #{conv2d_forward.2} parent=35 // loop_pre_header
                _
              $region38: #{conv2d_forward.2} parent=35 // loop_header
                %s120 = sphi 0, %s124
                %p121 = scmp.ge.s32.totalorder %s120, 1
                %s125 = sphi %s111, %s111
                %s126 = sphi %s109, %s109
              $region39: #{conv2d_forward.2} parent=35 // loop_header_branch
                %123 = sbr.rel (%p121) target = $region43
              $region40: #{conv2d_forward.2} parent=35 // loop_body
                %v127 = vld [vmem:[%s125] sm:$0xf]
                %128 = vst [vmem:[%s126] sm:$0xf] %v127
                %v129 = vld [vmem:[%s125 + $0x10] sm:$0xf]
                %130 = vst [vmem:[%s126 + $0x4] sm:$0xf] %v129
                %v131 = vld [vmem:[%s125 + $0x20] sm:$0xf]
                %132 = vst [vmem:[%s126 + $0x8] sm:$0xf] %v131
                %v133 = vld [vmem:[%s125 + $0x30] sm:$0xf]
                %134 = vst [vmem:[%s126 + $0xc] sm:$0xf] %v133
                %v135 = vld [vmem:[%s125 + $0x40] sm:$0xf]
                %136 = vst [vmem:[%s126 + $0x10] sm:$0xf] %v135
              $region41: #{conv2d_forward.2} parent=35 // loop_footer
                %s124 = sadd.s32 1, %s120
              $region42: #{conv2d_forward.2} parent=35 // loop_footer_branch
                %119 = sbr.rel target = $region38
              $region43: #{conv2d_forward.2} parent=35 // loop_exit
                _
            $region36: #{conv2d_forward.2} parent=27 // pred_fallthru
              _
          $region28: #{conv2d_forward.2} parent=23 // pred_fallthru
            _
          %166 = vnop
        $region24: #{conv2d_forward.2} parent=19 // pred_fallthru
          _
      $region20: #{conv2d_forward.2} parent=5 // pred_fallthru
        _
      %p167 = scmp.le.s32.totalorder 1, %s8
      %p168 = scmp.lt.s32.totalorder %s8, 5
      %p169 = pnand %p167, %p168
      %p170 = pneg %p169
      // Predicated region
      $region62: #{conv2d_forward.2} parent=5 // pred_check
        _
      $region63: #{conv2d_forward.2} parent=5 // pred_check_branch
        %172 = sbr.rel (%p169) target = $region65
      $region64: #{conv2d_forward.2} parent=5 // pred_region
        %s173 = ssub.s32 %s8, 1
        %s174 = sand.u32 %s21, 1
        %s175 = sand.u32 %s21, 1
        %s176 = smul.addr %s175, 20
        %s177 = scalar_lea.vmem [#allocation2], %s176
        // Predicated region
        $region66: #{conv2d_forward.2} parent=64 // pred_check
          %p178 = pneg %p34
        $region67: #{conv2d_forward.2} parent=64 // pred_check_branch
          %180 = sbr.rel (%p178) target = $region69
        $region68: #{conv2d_forward.2} parent=64 // pred_region
          _
        $region69: #{conv2d_forward.2} parent=64 // pred_fallthru
          _
        %s181 = sand.u32 %s21, 1
        %s182 = sand.u32 %s21, 1
        %s183 = smul.addr %s182, 20
        %s184 = scalar_lea.vmem [#allocation2], %s183
        %p185 = pneg %p34
        %p186 = pneg %p31
        %p187 = pneg %p55
        %p188 = pneg %p52
        %p189 = pneg %p81
        %p190 = pneg %p78
        %p191 = scmp.lt.s32.totalorder %s13, 3
        %s192 = scalar_select %p191, %s13, 3
        %s193 = smul.addr %s192, 8
        %s194 = scalar_lea.vmem %s2, %s193
        %p195 = scmp.lt.s32.totalorder %s13, 3
        %s196 = scalar_select %p195, %s13, 3
        %s197 = smul.addr %s196, 8
        %s198 = scalar_lea.vmem %s2, %s197
        %v200 = vld [vmem:[%s1] sm:$0xf]
        %v201 = vld [vmem:[%s177] sm:$0xf]
        %v202 = vld [vmem:[%s177 + $0x4] sm:$0xf]
        %v203 = vld [vmem:[%s177 + $0x8] sm:$0xf]
        %v204 = vld [vmem:[%s177 + $0xc] sm:$0xf]
        %v205 = vld [vmem:[%s177 + $0x10] sm:$0x3]
        %v211 = vunpack.c.l.b16 %v201
        %v212 = vunpack.c.l.b16 %v202
        %v213 = vunpack.c.l.b16 %v203
        %v214 = vunpack.c.l.b16 %v204
        %v215 = vunpack.c.l.b16 %v205
        %v216 = vpack.c.b16 %v212, %v211
        %v217 = vpack.c.b16 %v214, %v213
        %v218 = vpack.c.b16 %v215, %v215
        %vm221 = vcmask 293888
        %v223 = vsel %vm221, %v200, 0
        %vm225 = vcmask 1041408
        %v227 = vsel %vm225, %v218, 0
        %229 = vmatprep.subr.bf16.mxu0 0
        %230 = vmatpush1.bf16.msra.mxu0 %v216
        %231 = vmatprep.subr.bf16.mxu0 0
        %232 = vmatpush1.bf16.msra.mxu0 %v217
        %233 = vmatprep.subr.bf16.mxu0 0
        %234 = vmatpush1.bf16.msra.mxu0 %v227
        %235 = vmatprep.subr.bf16.mxu0 0
        %236 = vmatpush1.bf16.msra.mxu0 0
        %237 = vmatprep.subr.bf16.mxu0 0
        %238 = vmatpush1.bf16.msra.mxu0 0
        %239 = vmatprep.subr.bf16.mxu0 0
        %240 = vmatpush1.bf16.msra.mxu0 0
        %241 = vmatprep.subr.bf16.mxu0 0
        %242 = vmatpush1.bf16.msra.mxu0 0
        %243 = vmatprep.subr.bf16.mxu0 0
        %244 = vmatpush1.bf16.msra.mxu0 0
        %245 = vmatprep.subr.bf16.mxu0 0
        %246 = vmatpush1.bf16.msra.mxu0 0
        %247 = vmatprep.subr.bf16.mxu0 0
        %248 = vmatpush1.bf16.msra.mxu0 0
        %249 = vmatprep.subr.bf16.mxu0 0
        %250 = vmatpush1.bf16.msra.mxu0 0
        %251 = vmatprep.subr.bf16.mxu0 0
        %252 = vmatpush1.bf16.msra.mxu0 0
        %253 = vmatprep.subr.bf16.mxu0 0
        %254 = vmatpush1.bf16.msra.mxu0 0
        %255 = vmatprep.subr.bf16.mxu0 0
        %256 = vmatpush1.bf16.msra.mxu0 0
        %257 = vmatprep.subr.bf16.mxu0 0
        %258 = vmatpush1.bf16.msra.mxu0 0
        %259 = vmatprep.subr.bf16.mxu0 0
        %260 = vmatpush1.bf16.msra.mxu0 0
        %261 = vmatprep.mubr.bf16.mxu0 0
        %262 = vmatmul.mubr.bf16.gmra.mrb[0].mxu0 %v223
        %v263 = vpop.f32.mrb[0].mxu0
        %v264 = vadd.f32 0.0, %v263
        %v265 = vpop.f32.mrb[0].mxu0
        %v266 = vpop.f32.mrb[0].mxu0
        %v267 = vpop.f32.mrb[0].mxu0
        %268 = vdwg.mxu0
        %269 = vadd.xlane.f32.xlu0 %v264
        %v270 = vpop.xlane.xlu0 %269
        %v271 = vmul.f32 %v264, %v264
        %272 = vadd.xlane.f32.xlu0 %v271
        %v273 = vpop.xlane.xlu0 %272
        %vm274 = vcmask 7168
        %v275 = vsel %vm274, %v270, %v273
        %vm276 = vcmask 15360
        %277 = vst.msk [vmem:[%s198] sm:$0xff] %vm276, %v275
        %p278 = scmp.lt.s32.totalorder %s13, 3
        %s279 = scalar_select %p278, %s13, 3
        %s280 = smul.addr %s279, 8
        %s281 = scalar_lea.vmem %s2, %s280
        // Predicated region
        $region70: #{conv2d_forward.2} parent=64 // pred_check
          %p282 = pneg %p78
        $region71: #{conv2d_forward.2} parent=64 // pred_check_branch
          %284 = sbr.rel (%p282) target = $region73
        $region72: #{conv2d_forward.2} parent=64 // pred_region
          _
        $region73: #{conv2d_forward.2} parent=64 // pred_fallthru
          _
      $region65: #{conv2d_forward.2} parent=5 // pred_fallthru
        _
      %p285 = scmp.le.s32.totalorder 2, %s8
      // Predicated region
      $region74: #{conv2d_forward.2} parent=5 // pred_check
        %p286 = pneg %p285
      $region75: #{conv2d_forward.2} parent=5 // pred_check_branch
        %288 = sbr.rel (%p286) target = $region77
      $region76: #{conv2d_forward.2} parent=5 // pred_region
        %s289 = ssub.s32 %s8, 2
        // Predicated region
        $region78: #{conv2d_forward.2} parent=76 // pred_check
          %p290 = pneg %p84
        $region79: #{conv2d_forward.2} parent=76 // pred_check_branch
          %292 = sbr.rel (%p290) target = $region81
        $region80: #{conv2d_forward.2} parent=76 // pred_region
          %p293 = scmp.lt.s32.totalorder %s14, 3
          %s294 = scalar_select %p293, %s14, 3
          %s295 = smul.addr %s294, 8
          %s296 = scalar_lea.vmem %s2, %s295
        $region81: #{conv2d_forward.2} parent=76 // pred_fallthru
          _
      $region77: #{conv2d_forward.2} parent=5 // pred_fallthru
        _
    $region6: #{conv2d_forward.2} parent=1 // loop_footer
      %s12 = sadd.s32 1, %s8
    $region7: #{conv2d_forward.2} parent=1 // loop_footer_branch
      %7 = sbr.rel target = $region3
    $region8: #{conv2d_forward.2} parent=1 // loop_exit
      _

</llo_original>
